<compile_context>
chip_gen: v6e
topology: v6e:2x2x1
jax: 0.10.0
libtpu: 0.0.40
codegen_flags: <defaults>
</compile_context>

<pallas_src>
import jax
import jax.numpy as jnp
from jax.experimental import pallas as pl
from jax.experimental.pallas import tpu as pltpu


def _round_up(v, m):
    return (v + m - 1) // m * m


def _vmem_limit_bytes():
    # Generation-aware budget: ~75% of physical VMEM
    # (v5e/v6e 128 MiB -> 96 MiB, v7x 64 MiB -> 48 MiB), floor 32 MiB.
    try:
        cap = pltpu.get_tpu_info().vmem_capacity_bytes
    except Exception:
        cap = 64 * 1024 * 1024
    return max(32 * 1024 * 1024, min(int(cap) * 3 // 4, 96 * 1024 * 1024))


def _pick_tile(dim_p, target):
    """Largest multiple-of-128 divisor of dim_p that is <= target.

    dim_p must be a multiple of 128.  Prefers 256-aligned tiles so the
    2x256x256 MXU on v6e/v7x is fully occupied; falls back to any divisor
    (avoiding pad blow-up beats 256 alignment).
    """
    if dim_p <= target:
        return dim_p
    units = dim_p // 128
    max_u = max(target // 128, 1)
    cands = [u for u in range(max_u, 0, -1) if units % u == 0]
    for u in cands:
        if (u * 128) % 256 == 0:
            return u * 128
    return cands[0] * 128


# --------------------------------------------------------------------------
# Kernels
# --------------------------------------------------------------------------
def _single_block_kernel(c_ref, x_ref, o_ref):
    # Whole problem (or a half-M slab of it) resident in VMEM: one MXU pass.
    o_ref[...] = jnp.dot(
        c_ref[...], x_ref[...], preferred_element_type=jnp.float32
    ).astype(o_ref.dtype)


def _matmul_kernel_f32_out(c_ref, x_ref, o_ref):
    # f32 output: the output tile stays resident across the K axis (its block
    # index is independent of k).  Store the first partial directly -- no
    # zero-fill + read-modify-write pass on the output tile.
    part = jnp.dot(c_ref[...], x_ref[...], preferred_element_type=jnp.float32)

    @pl.when(pl.program_id(2) == 0)
    def _():
        o_ref[...] = part

    @pl.when(pl.program_id(2) != 0)
    def _():
        o_ref[...] += part


def _matmul_kernel_cast_out(c_ref, x_ref, o_ref, acc_ref):
    # Narrow output dtype: accumulate in an f32 scratch, cast on the last step.
    part = jnp.dot(c_ref[...], x_ref[...], preferred_element_type=jnp.float32)

    @pl.when(pl.program_id(2) == 0)
    def _():
        acc_ref[...] = part

    @pl.when(pl.program_id(2) != 0)
    def _():
        acc_ref[...] += part

    @pl.when(pl.program_id(2) == pl.num_programs(2) - 1)
    def _():
        o_ref[...] = acc_ref[...].astype(o_ref.dtype)


# --------------------------------------------------------------------------
# Wrapper
# --------------------------------------------------------------------------
_SINGLE_BLOCK_BYTES = 8 * 1024 * 1024   # fast-path ceiling (kept v7x-safe)


def self_expression_forward(coefficient, x, *, tm=None, tn=None, tk=None,
                            single_block=None, use_bf16=False):
    """y = coefficient @ x computed with a Pallas TPU matmul.

    use_bf16=True casts both operands to bfloat16 before the MXU (f32
    accumulation, original output dtype).  Opt-in: it changes numerics.
    """
    M, K = coefficient.shape
    K2, N = x.shape
    if K != K2:
        raise ValueError("inner dimensions must match")
    out_dtype = x.dtype

    if use_bf16:
        coefficient = coefficient.astype(jnp.bfloat16)
        x = x.astype(jnp.bfloat16)

    in_bytes = jnp.dtype(coefficient.dtype).itemsize
    out_bytes = jnp.dtype(out_dtype).itemsize
    vmem_limit = _vmem_limit_bytes()

    # Pad to 128 granularity only (<=127 element fringe per dim).  K/M/N
    # padding contributes exact zeros; padded rows/cols are sliced off below.
    Mp, Kp, Np = _round_up(M, 128), _round_up(K, 128), _round_up(N, 128)
    c_p = coefficient
    x_p = x
    if (Mp, Kp) != (M, K):
        c_p = jnp.pad(coefficient, ((0, Mp - M), (0, Kp - K)))
    if (Kp, Np) != (K, N):
        x_p = jnp.pad(x, ((0, Kp - K), (0, Np - N)))

    total_bytes = (Mp * Kp + Kp * Np) * in_bytes + Mp * Np * out_bytes
    if single_block is None:
        single_block = total_bytes <= _SINGLE_BLOCK_BYTES

    # ---- small-problem fast path -------------------------------------------
    # Whole operands resident; split M into two "parallel" blocks when large
    # enough so v7x's second TensorCore is not idle (negligible cost on 1-TC
    # v5e/v6e).
    if single_block:
        gm = 2 if Mp >= 256 else 1
        bm = Mp // gm
        cost = pl.CostEstimate(
            flops=2 * Mp * Np * Kp, transcendentals=0,
            bytes_accessed=total_bytes)
        y_p = pl.pallas_call(
            _single_block_kernel,
            out_shape=jax.ShapeDtypeStruct((Mp, Np), out_dtype),
            grid_spec=pltpu.PrefetchScalarGridSpec(
                num_scalar_prefetch=0,
                grid=(gm,),
                in_specs=[
                    pl.BlockSpec((bm, Kp), lambda i: (i, 0)),   # Coefficient
                    pl.BlockSpec((Kp, Np), lambda i: (0, 0)),   # x (shared)
                ],
                out_specs=pl.BlockSpec((bm, Np), lambda i: (i, 0)),
            ),
            compiler_params=pltpu.CompilerParams(
                dimension_semantics=("parallel",),
                vmem_limit_bytes=vmem_limit,
            ),
            cost_estimate=cost,
        )(c_p, x_p)
        if (Mp, Np) != (M, N):
            y_p = y_p[:M, :N]
        return y_p

    # ---- tiled path ----------------------------------------------------------
    # Tiles are exact divisors of the 128-rounded dims: no padding beyond the
    # 128 fringe.  With a single j block (N <= 1024) the big (N, N)
    # Coefficient is streamed from HBM exactly once.
    tm = _pick_tile(Mp, 512 if tm is None else tm)
    tk = _pick_tile(Kp, 512 if tk is None else tk)
    if tn is None:
        tn = Np if Np <= 1024 else _pick_tile(Np, 512)
    else:
        tn = _pick_tile(Np, tn)

    def footprint(tm_, tn_, tk_):
        buf = 2 * (tm_ * tk_ + tk_ * tn_) * in_bytes + 2 * tm_ * tn_ * out_bytes
        if jnp.dtype(out_dtype) != jnp.dtype(jnp.float32):
            buf += tm_ * tn_ * 4   # f32 accumulator scratch
        return buf

    # Keep the double-buffered footprint well inside the VMEM budget.
    while footprint(tm, tn, tk) > vmem_limit // 2:
        if tk > 128 and tk >= max(tm, tn):
            tk = _pick_tile(Kp, tk // 2)
        elif tn > 128 and tn >= tm:
            tn = _pick_tile(Np, tn // 2)
        elif tm > 128:
            tm = _pick_tile(Mp, tm // 2)
        else:
            break

    grid = (Mp // tm, Np // tn, Kp // tk)

    cost = pl.CostEstimate(
        flops=2 * Mp * Np * Kp,
        transcendentals=0,
        # Account for tiled re-reads: C once per j block, x once per i block.
        bytes_accessed=(Mp * Kp * in_bytes) * (Np // tn)
        + (Kp * Np * in_bytes) * (Mp // tm)
        + Mp * Np * out_bytes,
    )

    if jnp.dtype(out_dtype) == jnp.dtype(jnp.float32):
        kernel = _matmul_kernel_f32_out
        scratch_shapes = []          # accumulate directly into resident o_ref
    else:
        kernel = _matmul_kernel_cast_out
        scratch_shapes = [pltpu.VMEM((tm, tn), jnp.float32)]

    y_p = pl.pallas_call(
        kernel,
        out_shape=jax.ShapeDtypeStruct((Mp, Np), out_dtype),
        grid_spec=pltpu.PrefetchScalarGridSpec(
            num_scalar_prefetch=0,
            grid=grid,
            in_specs=[
                pl.BlockSpec((tm, tk), lambda i, j, k: (i, k)),  # Coefficient
                pl.BlockSpec((tk, tn), lambda i, j, k: (k, j)),  # x
            ],
            out_specs=pl.BlockSpec((tm, tn), lambda i, j, k: (i, j)),
            scratch_shapes=scratch_shapes,
        ),
        compiler_params=pltpu.CompilerParams(
            dimension_semantics=("parallel", "parallel", "arbitrary"),
            vmem_limit_bytes=vmem_limit,
        ),
        cost_estimate=cost,
    )(c_p, x_p)

    if (Mp, Np) != (M, N):
        y_p = y_p[:M, :N]
    return y_p


class SelfExpression:
    """JAX/Pallas port of the PyTorch SelfExpression module."""

    def __init__(self, c, *, use_bf16=False):
        # nn.Parameter(c) -> just hold the array (synthetic init, no checkpoint).
        self.Coefficient = c
        self.use_bf16 = use_bf16

    def __call__(self, x):
        return self_expression_forward(self.Coefficient, x,
                                       use_bf16=self.use_bf16)


if __name__ == "__main__":
    key = jax.random.PRNGKey(0)
    kc1, kx1, kc2, kx2 = jax.random.split(key, 4)

    # Case 1: demo-sized problem (N = 128 samples, D = 128 features).
    # Takes the single-block fast path (one MXU pass, grid of size 1).
    N1, D1 = 128, 128
    c1 = 1e-2 * jax.random.normal(kc1, (N1, N1), dtype=jnp.float32)
    x1 = jax.random.normal(kx1, (N1, D1), dtype=jnp.float32)

    module = SelfExpression(c1)
    y1 = jax.block_until_ready(module(x1))
    assert y1.shape == (N1, D1)
    assert jnp.allclose(y1, c1 @ x1, atol=1e-5, rtol=1e-5)

    # Case 2: non-tile-multiple shapes, forced onto the tiled path with small
    # tiles to exercise 128-granularity padding and multi-step K accumulation
    # into the resident f32 output tile (grid = (3, 1..2, 3)).
    N2, D2 = 300, 200
    c2 = 1e-2 * jax.random.normal(kc2, (N2, N2), dtype=jnp.float32)
    x2 = jax.random.normal(kx2, (N2, D2), dtype=jnp.float32)
    y2 = jax.block_until_ready(
        self_expression_forward(c2, x2, tm=128, tn=128, tk=128,
                                single_block=False)
    )
    assert y2.shape == (N2, D2)
    assert jnp.allclose(y2, c2 @ x2, atol=1e-4, rtol=1e-4)

    # Case 3: opt-in bf16 MXU path (f32 accumulation, f32 output), fast path
    # with a 2-wide parallel M grid (2-TensorCore aware on v7x).
    y3 = jax.block_until_ready(
        self_expression_forward(c2, x2, use_bf16=True)
    )
    assert y3.shape == (N2, D2)
    assert jnp.allclose(y3, c2 @ x2, atol=2e-2, rtol=2e-2)

    print("KERNEL_OK")
</pallas_src>

<mosaic_0001>
module attributes {stable_mosaic.version = 11 : i64} {
  func.func @_single_block_kernel(%arg0: i32, %arg1: memref<128x128xf32, #tpu.memory_space<vmem>>, %arg2: memref<128x128xf32, #tpu.memory_space<vmem>>, %arg3: memref<128x128xf32, #tpu.memory_space<vmem>>) attributes {dimension_semantics = [#tpu.dimension_semantics<parallel>], iteration_bounds = array<i64: 1>, scalar_prefetch = 0 : i64, scratch_operands = 0 : i64, tpu.core_type = #tpu.core_type<tc>, window_params = [{transform_indices = @transform_0, window_bounds = array<i64: 128, 128>}, {pipeline_mode = #tpu.pipeline_mode<synchronous>, transform_indices = @transform_1, window_bounds = array<i64: 128, 128>}, {transform_indices = @transform_2, window_bounds = array<i64: 128, 128>}]} {
    %c0 = arith.constant 0 : index
    %c0_0 = arith.constant 0 : index
    %0 = vector.load %arg1[%c0, %c0_0] : memref<128x128xf32, #tpu.memory_space<vmem>>, vector<128x128xf32>
    %c0_1 = arith.constant 0 : index
    %c0_2 = arith.constant 0 : index
    %1 = vector.load %arg2[%c0_1, %c0_2] : memref<128x128xf32, #tpu.memory_space<vmem>>, vector<128x128xf32>
    %cst = arith.constant dense<0.000000e+00> : vector<128x128xf32>
    %2 = tpu.matmul %0, %1, %cst {dimension_numbers = #tpu.dot_dimension_numbers<[1], [0], [0], [1], [0, 0, 1, 1], [], []>} : vector<128x128xf32>, vector<128x128xf32>, vector<128x128xf32> -> vector<128x128xf32>
    %c0_3 = arith.constant 0 : index
    %c0_4 = arith.constant 0 : index
    %3 = vector.load %arg3[%c0_3, %c0_4] : memref<128x128xf32, #tpu.memory_space<vmem>>, vector<128x128xf32>
    tpu.vector_store %arg3[%c0_3, %c0_4], %2 {strides = array<i32>} : memref<128x128xf32, #tpu.memory_space<vmem>>, vector<128x128xf32>,
    return
  }
  func.func @transform_0(%arg0: i32) -> (i32, i32) {
    %c0_i32 = arith.constant 0 : i32
    %c0_i32_0 = arith.constant 0 : i32
    return %arg0, %c0_i32 : i32, i32
  }
  func.func @transform_1(%arg0: i32) -> (i32, i32) {
    %c0_i32 = arith.constant 0 : i32
    %c0_i32_0 = arith.constant 0 : i32
    %c0_i32_1 = arith.constant 0 : i32
    return %c0_i32, %c0_i32_0 : i32, i32
  }
  func.func @transform_2(%arg0: i32) -> (i32, i32) {
    %c0_i32 = arith.constant 0 : i32
    %c0_i32_0 = arith.constant 0 : i32
    return %arg0, %c0_i32 : i32, i32
  }
}

</mosaic_0001>

<llo_original>
// kernel: tpu_custom_call.1
$region0: #{tpu_custom_call.1}
  #allocation0 [shape = 'u32[]', space=smem, size = 0x4, offset = 0x4, fixed_abs, tag = 'smem constant byte address 0x4 - core index']
  #allocation1 [shape = 'u32[144,128]{1,0:T(1,128)}', space=vmem, size = 0x12000, scoped, tag = 'internal scratch']
  %s0 = inlined_call_operand.hbm [shape: f32[128,128], index: 0, kind: input, shape index: {}]
  %s1 = inlined_call_operand.hbm [shape: f32[128,128], index: 1, kind: input, shape index: {}]
  %s2 = inlined_call_operand.hbm [shape: f32[128,128], index: 2, kind: output, shape index: {}]
  %s3 = sld [smem:[#allocation0]]
  $region26: #{tpu_custom_call.1} parent=0
    _
  %s5 = ssub.s32 1, %s3
  %s6 = scalar_select 0, %s5, %s3
  $region1: #{tpu_custom_call.1} parent=0
    #allocation2 [shape = 'u8[65536]{0}', space=vmem, size = 0x10000, scoped, tag = 'input window, operand 0, single buffered']
    #allocation3 [shape = 's32[1]{0}', space=sflag, size = 0x4, scoped, tag = 'scoped memory for tpu_custom_call.1']
    #allocation4 [shape = 's32[1]{0}', space=sflag, size = 0x4, scoped, tag = 'scoped memory for tpu_custom_call.1']
    #allocation5 [shape = 'u8[65536]{0}', space=vmem, size = 0x10000, scoped, tag = 'input window, operand 1, single buffered']
    #allocation6 [shape = 's32[1]{0}', space=sflag, size = 0x4, scoped, tag = 'scoped memory for tpu_custom_call.1']
    #allocation7 [shape = 'u8[65536]{0}', space=vmem, size = 0x10000, scoped, tag = 'output window, operand 0, single buffered']
    %7 = vsyncpa [#allocation3], 0
    %8 = vsyncpa [#allocation6], 0
    %9 = vsyncpa [#allocation4], 0
    // Predicated region
    $region2: #{tpu_custom_call.1} parent=1 // pred_check
      _
    $region3: #{tpu_custom_call.1} parent=1 // pred_check_branch
      %11 = sbr.rel (0) target = $region5
    $region4: #{tpu_custom_call.1} parent=1 // pred_region
      %s13 = ssub.s32 2048, 2048
      %14 = vsyncadd [#allocation3], %s13
      %s15 = sshll.u32 [#allocation2], 4
      %s16 = int_to_ptr.vmem [resolvable:$true] %s15
      %21 = dma.hbm_to_vmem [thread:$0]  %s0, 2048, %s16, [#allocation3], 128, 128, 8
    $region5: #{tpu_custom_call.1} parent=1 // pred_fallthru
      _
    // Predicated region
    $region6: #{tpu_custom_call.1} parent=1 // pred_check
      _
    $region7: #{tpu_custom_call.1} parent=1 // pred_check_branch
      %23 = sbr.rel (0) target = $region9
    $region8: #{tpu_custom_call.1} parent=1 // pred_region
      %s25 = ssub.s32 2048, 2048
      %26 = vsyncadd [#allocation6], %s25
      %s27 = sshll.u32 [#allocation5], 4
      %s28 = int_to_ptr.vmem [resolvable:$true] %s27
      %33 = dma.hbm_to_vmem [thread:$0]  %s1, 2048, %s28, [#allocation6], 128, 128, 8
    $region9: #{tpu_custom_call.1} parent=1 // pred_fallthru
      _
    // Predicated region
    $region10: #{tpu_custom_call.1} parent=1 // pred_check
      _
    $region11: #{tpu_custom_call.1} parent=1 // pred_check_branch
      %35 = sbr.rel (0) target = $region13
    $region12: #{tpu_custom_call.1} parent=1 // pred_region
      %36 = dma.done [#allocation3], 2048
    $region13: #{tpu_custom_call.1} parent=1 // pred_fallthru
      _
    // Predicated region
    $region14: #{tpu_custom_call.1} parent=1 // pred_check
      _
    $region15: #{tpu_custom_call.1} parent=1 // pred_check_branch
      %38 = sbr.rel (0) target = $region17
    $region16: #{tpu_custom_call.1} parent=1 // pred_region
      %39 = dma.done [#allocation6], 2048
    $region17: #{tpu_custom_call.1} parent=1 // pred_fallthru
      _
    %v40 = vld [vmem:[#allocation2] sm:$0xff]
    %v41 = vld [vmem:[#allocation2 + $0x8] sm:$0xff]
    %v42 = vld [vmem:[#allocation2 + $0x10] sm:$0xff]
    %v43 = vld [vmem:[#allocation2 + $0x18] sm:$0xff]
    %v44 = vld [vmem:[#allocation2 + $0x20] sm:$0xff]
    %v45 = vld [vmem:[#allocation2 + $0x28] sm:$0xff]
    %v46 = vld [vmem:[#allocation2 + $0x30] sm:$0xff]
    %v47 = vld [vmem:[#allocation2 + $0x38] sm:$0xff]
    %v48 = vld [vmem:[#allocation2 + $0x40] sm:$0xff]
    %v49 = vld [vmem:[#allocation2 + $0x48] sm:$0xff]
    %v50 = vld [vmem:[#allocation2 + $0x50] sm:$0xff]
    %v51 = vld [vmem:[#allocation2 + $0x58] sm:$0xff]
    %v52 = vld [vmem:[#allocation2 + $0x60] sm:$0xff]
    %v53 = vld [vmem:[#allocation2 + $0x68] sm:$0xff]
    %v54 = vld [vmem:[#allocation2 + $0x70] sm:$0xff]
    %v55 = vld [vmem:[#allocation2 + $0x78] sm:$0xff]
    %v56 = vld [vmem:[#allocation5] sm:$0xff]
    %v57 = vld [vmem:[#allocation5 + $0x8] sm:$0xff]
    %v58 = vld [vmem:[#allocation5 + $0x10] sm:$0xff]
    %v59 = vld [vmem:[#allocation5 + $0x18] sm:$0xff]
    %v60 = vld [vmem:[#allocation5 + $0x20] sm:$0xff]
    %v61 = vld [vmem:[#allocation5 + $0x28] sm:$0xff]
    %v62 = vld [vmem:[#allocation5 + $0x30] sm:$0xff]
    %v63 = vld [vmem:[#allocation5 + $0x38] sm:$0xff]
    %v64 = vld [vmem:[#allocation5 + $0x40] sm:$0xff]
    %v65 = vld [vmem:[#allocation5 + $0x48] sm:$0xff]
    %v66 = vld [vmem:[#allocation5 + $0x50] sm:$0xff]
    %v67 = vld [vmem:[#allocation5 + $0x58] sm:$0xff]
    %v68 = vld [vmem:[#allocation5 + $0x60] sm:$0xff]
    %v69 = vld [vmem:[#allocation5 + $0x68] sm:$0xff]
    %v70 = vld [vmem:[#allocation5 + $0x70] sm:$0xff]
    %v71 = vld [vmem:[#allocation5 + $0x78] sm:$0xff]
    %72 = vmatprep.subr.mxu0 0.0
    %73 = vmatpush1.msra.mxu0 %v71
    %74 = vmatprep.subr.mxu0 0.0
    %75 = vmatpush1.msra.mxu0 %v70
    %76 = vmatprep.subr.mxu0 0.0
    %77 = vmatpush1.msra.mxu0 %v69
    %78 = vmatprep.subr.mxu0 0.0
    %79 = vmatpush1.msra.mxu0 %v68
    %80 = vmatprep.subr.mxu0 0.0
    %81 = vmatpush1.msra.mxu0 %v67
    %82 = vmatprep.subr.mxu0 0.0
    %83 = vmatpush1.msra.mxu0 %v66
    %84 = vmatprep.subr.mxu0 0.0
    %85 = vmatpush1.msra.mxu0 %v65
    %86 = vmatprep.subr.mxu0 0.0
    %87 = vmatpush1.msra.mxu0 %v64
    %88 = vmatprep.subr.mxu0 0.0
    %89 = vmatpush1.msra.mxu0 %v63
    %90 = vmatprep.subr.mxu0 0.0
    %91 = vmatpush1.msra.mxu0 %v62
    %92 = vmatprep.subr.mxu0 0.0
    %93 = vmatpush1.msra.mxu0 %v61
    %94 = vmatprep.subr.mxu0 0.0
    %95 = vmatpush1.msra.mxu0 %v60
    %96 = vmatprep.subr.mxu0 0.0
    %97 = vmatpush1.msra.mxu0 %v59
    %98 = vmatprep.subr.mxu0 0.0
    %99 = vmatpush1.msra.mxu0 %v58
    %100 = vmatprep.subr.mxu0 0.0
    %101 = vmatpush1.msra.mxu0 %v57
    %102 = vmatprep.subr.mxu0 0.0
    %103 = vmatpush1.msra.mxu0 %v56
    %104 = vmatprep.subr.mxu0 0.0
    %105 = vmatpush2.msra.mxu0 0.0
    %106 = vmatprep.subr.mxu0 0.0
    %107 = vmatpush2.msra.mxu0 0.0
    %108 = vmatprep.subr.mxu0 0.0
    %109 = vmatpush2.msra.mxu0 0.0
    %110 = vmatprep.subr.mxu0 0.0
    %111 = vmatpush2.msra.mxu0 0.0
    %112 = vmatprep.subr.mxu0 0.0
    %113 = vmatpush2.msra.mxu0 0.0
    %114 = vmatprep.subr.mxu0 0.0
    %115 = vmatpush2.msra.mxu0 0.0
    %116 = vmatprep.subr.mxu0 0.0
    %117 = vmatpush2.msra.mxu0 0.0
    %118 = vmatprep.subr.mxu0 0.0
    %119 = vmatpush2.msra.mxu0 0.0
    %120 = vmatprep.subr.mxu0 0.0
    %121 = vmatpush2.msra.mxu0 0.0
    %122 = vmatprep.subr.mxu0 0.0
    %123 = vmatpush2.msra.mxu0 0.0
    %124 = vmatprep.subr.mxu0 0.0
    %125 = vmatpush2.msra.mxu0 0.0
    %126 = vmatprep.subr.mxu0 0.0
    %127 = vmatpush2.msra.mxu0 0.0
    %128 = vmatprep.subr.mxu0 0.0
    %129 = vmatpush2.msra.mxu0 0.0
    %130 = vmatprep.subr.mxu0 0.0
    %131 = vmatpush2.msra.mxu0 0.0
    %132 = vmatprep.subr.mxu0 0.0
    %133 = vmatpush2.msra.mxu0 0.0
    %134 = vmatprep.subr.mxu0 0.0
    %135 = vmatpush2.msra.mxu0 0.0
    %136 = vmatprep.mubr.f32.mxu0 0.0
    %137 = vmatmul.mubr.f32.gmra.mxu0 %v40
    %v138 = vpop.f32.mrf.mxu0
    %v139 = vadd.f32 0.0, %v138
    %v140 = vpop.f32.mrf.mxu0
    %141 = vmatprep.mubr.f32.mxu0 0.0
    %142 = vmatmul.mubr.f32.gmra.mxu0 %v41
    %v143 = vpop.f32.mrf.mxu0
    %v144 = vadd.f32 0.0, %v143
    %v145 = vpop.f32.mrf.mxu0
    %146 = vmatprep.mubr.f32.mxu0 0.0
    %147 = vmatmul.mubr.f32.gmra.mxu0 %v42
    %v148 = vpop.f32.mrf.mxu0
    %v149 = vadd.f32 0.0, %v148
    %v150 = vpop.f32.mrf.mxu0
    %151 = vmatprep.mubr.f32.mxu0 0.0
    %152 = vmatmul.mubr.f32.gmra.mxu0 %v43
    %v153 = vpop.f32.mrf.mxu0
    %v154 = vadd.f32 0.0, %v153
    %v155 = vpop.f32.mrf.mxu0
    %156 = vmatprep.mubr.f32.mxu0 0.0
    %157 = vmatmul.mubr.f32.gmra.mxu0 %v44
    %v158 = vpop.f32.mrf.mxu0
    %v159 = vadd.f32 0.0, %v158
    %v160 = vpop.f32.mrf.mxu0
    %161 = vmatprep.mubr.f32.mxu0 0.0
    %162 = vmatmul.mubr.f32.gmra.mxu0 %v45
    %v163 = vpop.f32.mrf.mxu0
    %v164 = vadd.f32 0.0, %v163
    %v165 = vpop.f32.mrf.mxu0
    %166 = vmatprep.mubr.f32.mxu0 0.0
    %167 = vmatmul.mubr.f32.gmra.mxu0 %v46
    %v168 = vpop.f32.mrf.mxu0
    %v169 = vadd.f32 0.0, %v168
    %v170 = vpop.f32.mrf.mxu0
    %171 = vmatprep.mubr.f32.mxu0 0.0
    %172 = vmatmul.mubr.f32.gmra.mxu0 %v47
    %v173 = vpop.f32.mrf.mxu0
    %v174 = vadd.f32 0.0, %v173
    %v175 = vpop.f32.mrf.mxu0
    %176 = vmatprep.mubr.f32.mxu0 0.0
    %177 = vmatmul.mubr.f32.gmra.mxu0 %v48
    %v178 = vpop.f32.mrf.mxu0
    %v179 = vadd.f32 0.0, %v178
    %v180 = vpop.f32.mrf.mxu0
    %181 = vmatprep.mubr.f32.mxu0 0.0
    %182 = vmatmul.mubr.f32.gmra.mxu0 %v49
    %v183 = vpop.f32.mrf.mxu0
    %v184 = vadd.f32 0.0, %v183
    %v185 = vpop.f32.mrf.mxu0
    %186 = vmatprep.mubr.f32.mxu0 0.0
    %187 = vmatmul.mubr.f32.gmra.mxu0 %v50
    %v188 = vpop.f32.mrf.mxu0
    %v189 = vadd.f32 0.0, %v188
    %v190 = vpop.f32.mrf.mxu0
    %191 = vmatprep.mubr.f32.mxu0 0.0
    %192 = vmatmul.mubr.f32.gmra.mxu0 %v51
    %v193 = vpop.f32.mrf.mxu0
    %v194 = vadd.f32 0.0, %v193
    %v195 = vpop.f32.mrf.mxu0
    %196 = vmatprep.mubr.f32.mxu0 0.0
    %197 = vmatmul.mubr.f32.gmra.mxu0 %v52
    %v198 = vpop.f32.mrf.mxu0
    %v199 = vadd.f32 0.0, %v198
    %v200 = vpop.f32.mrf.mxu0
    %201 = vmatprep.mubr.f32.mxu0 0.0
    %202 = vmatmul.mubr.f32.gmra.mxu0 %v53
    %v203 = vpop.f32.mrf.mxu0
    %v204 = vadd.f32 0.0, %v203
    %v205 = vpop.f32.mrf.mxu0
    %206 = vmatprep.mubr.f32.mxu0 0.0
    %207 = vmatmul.mubr.f32.gmra.mxu0 %v54
    %v208 = vpop.f32.mrf.mxu0
    %v209 = vadd.f32 0.0, %v208
    %v210 = vpop.f32.mrf.mxu0
    %211 = vmatprep.mubr.f32.mxu0 0.0
    %212 = vmatmul.mubr.f32.gmra.mxu0 %v55
    %v213 = vpop.f32.mrf.mxu0
    %v214 = vadd.f32 0.0, %v213
    %v215 = vpop.f32.mrf.mxu0
    %216 = vdwg.mxu0
    %217 = vst [vmem:[#allocation7] sm:$0xff] %v139
    %218 = vst [vmem:[#allocation7 + $0x8] sm:$0xff] %v144
    %219 = vst [vmem:[#allocation7 + $0x10] sm:$0xff] %v149
    %220 = vst [vmem:[#allocation7 + $0x18] sm:$0xff] %v154
    %221 = vst [vmem:[#allocation7 + $0x20] sm:$0xff] %v159
    %222 = vst [vmem:[#allocation7 + $0x28] sm:$0xff] %v164
    %223 = vst [vmem:[#allocation7 + $0x30] sm:$0xff] %v169
    %224 = vst [vmem:[#allocation7 + $0x38] sm:$0xff] %v174
    %225 = vst [vmem:[#allocation7 + $0x40] sm:$0xff] %v179
    %226 = vst [vmem:[#allocation7 + $0x48] sm:$0xff] %v184
    %227 = vst [vmem:[#allocation7 + $0x50] sm:$0xff] %v189
    %228 = vst [vmem:[#allocation7 + $0x58] sm:$0xff] %v194
    %229 = vst [vmem:[#allocation7 + $0x60] sm:$0xff] %v199
    %230 = vst [vmem:[#allocation7 + $0x68] sm:$0xff] %v204
    %231 = vst [vmem:[#allocation7 + $0x70] sm:$0xff] %v209
    %232 = vst [vmem:[#allocation7 + $0x78] sm:$0xff] %v214
    // Predicated region
    $region18: #{tpu_custom_call.1} parent=1 // pred_check
      _
    $region19: #{tpu_custom_call.1} parent=1 // pred_check_branch
      %234 = sbr.rel (0) target = $region21
    $region20: #{tpu_custom_call.1} parent=1 // pred_region
      %s236 = ssub.s32 2048, 2048
      %237 = vsyncadd [#allocation4], %s236
      %s238 = sshll.u32 [#allocation7], 4
      %s239 = int_to_ptr.vmem [resolvable:$true] %s238
      %244 = dma.vmem_to_hbm [thread:$0]  %s239, 2048, %s2, [#allocation4], 128, 128, 8
    $region21: #{tpu_custom_call.1} parent=1 // pred_fallthru
      _
    // Predicated region
    $region22: #{tpu_custom_call.1} parent=1 // pred_check
      _
    $region23: #{tpu_custom_call.1} parent=1 // pred_check_branch
      %246 = sbr.rel (0) target = $region25
    $region24: #{tpu_custom_call.1} parent=1 // pred_region
      %247 = dma.done [#allocation4], 2048
    $region25: #{tpu_custom_call.1} parent=1 // pred_fallthru
      _
    %248 = vsyncpa [#allocation3], 1
    %249 = vsyncpa [#allocation6], 1
    %250 = vsyncpa [#allocation4], 1

</llo_original>
